<compile_context>
chip_gen: v6e
topology: v6e:2x2x1
jax: 0.10.0
libtpu: 0.0.40
codegen_flags: <defaults>
</compile_context>

<pallas_src>
import jax
import jax.numpy as jnp
from jax.experimental import pallas as pl
from jax.experimental.pallas import tpu as pltpu


def fused_attn_kernel(q_ref, wt_ref, b_ref, ks_ref, o_ref):
    # q_ref:  (bb, tq, H)   query tile (bb batch elements x tq query rows)
    # wt_ref: (H, H)        pre-transposed Linear weight (W.T), VMEM-resident
    # b_ref:  (1, H)        Linear bias
    # ks_ref: (bb, Lk, H)   all keys of those bb batch elements
    # o_ref:  (bb, tq, Lk)  softmax(h @ ks^T) output tile
    bb, tq, H = q_ref.shape

    # ---- fused Linear: h = q @ W^T + b as one flattened MXU matmul ----------
    q2d = q_ref[...].reshape(bb * tq, H)
    h2d = jnp.dot(q2d, wt_ref[...], preferred_element_type=jnp.float32)
    h = (h2d + b_ref[...]).reshape(bb, tq, H)

    # ---- energies = h @ ks^T (contract H, batched over bb; no XLU transpose)
    e = jnp.einsum(
        "bqh,bkh->bqk", h, ks_ref[...],
        preferred_element_type=jnp.float32,
    )  # (bb, tq, Lk)

    # ---- numerically stable softmax over the key dimension ------------------
    m = jnp.max(e, axis=-1, keepdims=True)
    p = jnp.exp(e - m)
    denom = jnp.sum(p, axis=-1, keepdims=True)
    # Exact reciprocal keeps softmax semantics; approx=True would move the
    # divide to the EUP slot at ~1e-3 relative error (not taken here).
    o_ref[...] = (p * pl.reciprocal(denom, approx=False)).astype(o_ref.dtype)


def _device_budget():
    """Generation-aware (vmem_limit_bytes, max Lq tile).

    v5e / v6e have 128 MiB physical VMEM -> large scoped limit and big tiles.
    v7x has 64 MiB per TensorCore (and anything we cannot query, e.g. the
    interpret-mode emulator) -> stay at the conservative 32 MiB default.
    """
    try:
        vmem_cap = pltpu.get_tpu_info().vmem_capacity_bytes
    except Exception:
        vmem_cap = 0
    if vmem_cap >= 100 * 1024 * 1024:          # v5e / v6e
        return 96 * 1024 * 1024, 1024
    return 32 * 1024 * 1024, 256               # v7x or unknown


def attn_forward(q, ks, weight, bias):
    """Forward pass of Attn(method='general').

    q:      (B, Lq, H) float32
    ks:     (B, Lk, H) float32
    weight: (H, H) torch-style (out_features, in_features)
    bias:   (H,)
    returns (B, Lq, Lk) float32 attention weights.
    """
    B, Lq, H = q.shape
    _, Lk, _ = ks.shape
    vmem_limit, tq_max = _device_budget()

    wt = weight.T.astype(jnp.float32)          # kernel computes x @ wt  (= x @ W^T)
    b2d = bias.reshape(1, H).astype(jnp.float32)

    # ---- tile selection ------------------------------------------------------
    tq = Lq if Lq <= tq_max else tq_max        # tq_max is a multiple of 128

    def step_bytes(bb_, tq_):
        # double-buffered q/ks/out blocks + resident W^T and bias, all f32
        return 4 * (2 * bb_ * (tq_ * H + Lk * H + tq_ * Lk) + 2 * (H * H + H))

    bb = 1
    if Lq <= tq_max and step_bytes(B, Lq) <= vmem_limit // 4:
        # Small problem (e.g. the demo): collapse everything into one grid step
        # instead of paying ~0.35us of per-step overhead B times.
        bb, tq = B, Lq

    grid = (pl.cdiv(B, bb), pl.cdiv(Lq, tq))

    return pl.pallas_call(
        fused_attn_kernel,
        out_shape=jax.ShapeDtypeStruct((B, Lq, Lk), jnp.float32),
        grid_spec=pltpu.PrefetchScalarGridSpec(
            num_scalar_prefetch=0,
            grid=grid,
            in_specs=[
                pl.BlockSpec((bb, tq, H), lambda b, i: (b, i, 0)),
                pl.BlockSpec((H, H), lambda b, i: (0, 0)),     # W^T, VMEM-resident
                pl.BlockSpec((1, H), lambda b, i: (0, 0)),     # bias, VMEM-resident
                pl.BlockSpec((bb, Lk, H), lambda b, i: (b, 0, 0)),
            ],
            out_specs=pl.BlockSpec((bb, tq, Lk), lambda b, i: (b, i, 0)),
        ),
        compiler_params=pltpu.CompilerParams(
            dimension_semantics=("parallel", "parallel"),
            vmem_limit_bytes=vmem_limit,
        ),
    )(q.astype(jnp.float32), wt, b2d, ks.astype(jnp.float32))


if __name__ == "__main__":
    # Small shapes consistent with the module: batch=2, seq=8, hidden=32
    B, Lq, Lk, H = 2, 8, 8, 32

    key = jax.random.PRNGKey(0)
    kq, kk, kw, kb = jax.random.split(key, 4)

    q = jax.random.normal(kq, (B, Lq, H), dtype=jnp.float32)
    ks = jax.random.normal(kk, (B, Lk, H), dtype=jnp.float32)
    # Deterministic synthetic parameters for nn.Linear(hidden, hidden)
    weight = jax.random.normal(kw, (H, H), dtype=jnp.float32) * (1.0 / jnp.sqrt(H))
    bias = jax.random.normal(kb, (H,), dtype=jnp.float32) * 0.01

    out = jax.block_until_ready(attn_forward(q, ks, weight, bias))

    # Pure-JAX reference check (high-precision matmuls)
    hp = jax.lax.Precision.HIGHEST
    h_ref = jnp.einsum("bqh,oh->bqo", q, weight, precision=hp) + bias
    e_ref = jnp.einsum("bqh,bkh->bqk", h_ref, ks, precision=hp)
    ref = jax.nn.softmax(e_ref, axis=-1)

    assert out.shape == (B, Lq, Lk)
    max_err = float(jnp.max(jnp.abs(out - ref)))
    assert max_err < 1e-3, f"max abs error {max_err}"
    assert jnp.allclose(jnp.sum(out, axis=-1), 1.0, atol=1e-4)

    print("KERNEL_OK")
</pallas_src>

<mosaic_0001>
module attributes {stable_mosaic.version = 11 : i64} {
  func.func @fused_attn_kernel(%arg0: i32, %arg1: i32, %arg2: memref<2x8x32xf32, #tpu.memory_space<vmem>>, %arg3: memref<32x32xf32, #tpu.memory_space<vmem>>, %arg4: memref<1x32xf32, #tpu.memory_space<vmem>>, %arg5: memref<2x8x32xf32, #tpu.memory_space<vmem>>, %arg6: memref<2x8x8xf32, #tpu.memory_space<vmem>>) attributes {dimension_semantics = [#tpu.dimension_semantics<parallel>, #tpu.dimension_semantics<parallel>], iteration_bounds = array<i64: 1, 1>, scalar_prefetch = 0 : i64, scratch_operands = 0 : i64, tpu.core_type = #tpu.core_type<tc>, window_params = [{transform_indices = @transform_0, window_bounds = array<i64: 2, 8, 32>}, {pipeline_mode = #tpu.pipeline_mode<synchronous>, transform_indices = @transform_1, window_bounds = array<i64: 32, 32>}, {pipeline_mode = #tpu.pipeline_mode<synchronous>, transform_indices = @transform_2, window_bounds = array<i64: 1, 32>}, {transform_indices = @transform_3, window_bounds = array<i64: 2, 8, 32>}, {transform_indices = @transform_4, window_bounds = array<i64: 2, 8, 8>}]} {
    %c0 = arith.constant 0 : index
    %c0_0 = arith.constant 0 : index
    %c0_1 = arith.constant 0 : index
    %0 = vector.load %arg2[%c0, %c0_0, %c0_1] : memref<2x8x32xf32, #tpu.memory_space<vmem>>, vector<2x8x32xf32>
    %1 = vector.shape_cast %0 : vector<2x8x32xf32> to vector<16x32xf32>
    %c0_2 = arith.constant 0 : index
    %c0_3 = arith.constant 0 : index
    %2 = vector.load %arg3[%c0_2, %c0_3] : memref<32x32xf32, #tpu.memory_space<vmem>>, vector<32x32xf32>
    %cst = arith.constant dense<0.000000e+00> : vector<16x32xf32>
    %3 = tpu.matmul %1, %2, %cst {dimension_numbers = #tpu.dot_dimension_numbers<[1], [0], [0], [1], [0, 0, 1, 1], [], []>} : vector<16x32xf32>, vector<32x32xf32>, vector<16x32xf32> -> vector<16x32xf32>
    %c0_4 = arith.constant 0 : index
    %c0_5 = arith.constant 0 : index
    %4 = vector.load %arg4[%c0_4, %c0_5] : memref<1x32xf32, #tpu.memory_space<vmem>>, vector<1x32xf32>
    %5 = vector.broadcast %4 : vector<1x32xf32> to vector<16x32xf32>
    %6 = arith.addf %3, %5 : vector<16x32xf32>
    %7 = vector.shape_cast %6 : vector<16x32xf32> to vector<2x8x32xf32>
    %c0_6 = arith.constant 0 : index
    %c0_7 = arith.constant 0 : index
    %c0_8 = arith.constant 0 : index
    %8 = vector.load %arg5[%c0_6, %c0_7, %c0_8] : memref<2x8x32xf32, #tpu.memory_space<vmem>>, vector<2x8x32xf32>
    "tpu.trace_start"() <{level = 10 : i32, message = "bqh,bkh->bqk"}> : () -> ()
    %cst_9 = arith.constant dense<0.000000e+00> : vector<2x8x8xf32>
    %9 = tpu.matmul %7, %8, %cst_9 {dimension_numbers = #tpu.dot_dimension_numbers<[2], [2], [1], [1], [0, 0, 0, 1, 1, 1], [0], [0]>} : vector<2x8x32xf32>, vector<2x8x32xf32>, vector<2x8x8xf32> -> vector<2x8x8xf32>
    "tpu.trace_stop"() : () -> ()
    %cst_10 = arith.constant dense<0xFF800000> : vector<2x8xf32>
    %10 = vector.multi_reduction <maximumf>, %9, %cst_10 [2] : vector<2x8x8xf32> to vector<2x8xf32>
    %11 = vector.shape_cast %10 : vector<2x8xf32> to vector<2x8x1xf32>
    %12 = vector.broadcast %11 : vector<2x8x1xf32> to vector<2x8x8xf32>
    %13 = arith.subf %9, %12 : vector<2x8x8xf32>
    %14 = math.exp %13 : vector<2x8x8xf32>
    %cst_11 = arith.constant dense<0.000000e+00> : vector<2x8xf32>
    %15 = vector.multi_reduction <add>, %14, %cst_11 [2] : vector<2x8x8xf32> to vector<2x8xf32>
    %16 = vector.shape_cast %15 : vector<2x8xf32> to vector<2x8x1xf32>
    %17 = tpu.reciprocal %16 : vector<2x8x1xf32> -> vector<2x8x1xf32>
    %18 = vector.broadcast %17 : vector<2x8x1xf32> to vector<2x8x8xf32>
    %19 = arith.mulf %14, %18 : vector<2x8x8xf32>
    %c0_12 = arith.constant 0 : index
    %c0_13 = arith.constant 0 : index
    %c0_14 = arith.constant 0 : index
    %20 = vector.load %arg6[%c0_12, %c0_13, %c0_14] : memref<2x8x8xf32, #tpu.memory_space<vmem>>, vector<2x8x8xf32>
    tpu.vector_store %arg6[%c0_12, %c0_13, %c0_14], %19 {strides = array<i32>} : memref<2x8x8xf32, #tpu.memory_space<vmem>>, vector<2x8x8xf32>,
    return
  }
  func.func @transform_0(%arg0: i32, %arg1: i32) -> (i32, i32, i32) {
    %c0_i32 = arith.constant 0 : i32
    %c0_i32_0 = arith.constant 0 : i32
    return %arg0, %arg1, %c0_i32 : i32, i32, i32
  }
  func.func @transform_1(%arg0: i32, %arg1: i32) -> (i32, i32) {
    %c0_i32 = arith.constant 0 : i32
    %c0_i32_0 = arith.constant 0 : i32
    %c0_i32_1 = arith.constant 0 : i32
    return %c0_i32, %c0_i32_0 : i32, i32
  }
  func.func @transform_2(%arg0: i32, %arg1: i32) -> (i32, i32) {
    %c0_i32 = arith.constant 0 : i32
    %c0_i32_0 = arith.constant 0 : i32
    %c0_i32_1 = arith.constant 0 : i32
    return %c0_i32, %c0_i32_0 : i32, i32
  }
  func.func @transform_3(%arg0: i32, %arg1: i32) -> (i32, i32, i32) {
    %c0_i32 = arith.constant 0 : i32
    %c0_i32_0 = arith.constant 0 : i32
    %c0_i32_1 = arith.constant 0 : i32
    return %arg0, %c0_i32, %c0_i32_0 : i32, i32, i32
  }
  func.func @transform_4(%arg0: i32, %arg1: i32) -> (i32, i32, i32) {
    %c0_i32 = arith.constant 0 : i32
    %c0_i32_0 = arith.constant 0 : i32
    return %arg0, %arg1, %c0_i32 : i32, i32, i32
  }
}

</mosaic_0001>

<llo_original>
// kernel: tpu_custom_call.1
$region0: #{tpu_custom_call.1}
  #allocation0 [shape = 'u32[]', space=smem, size = 0x4, offset = 0x4, fixed_abs, tag = 'smem constant byte address 0x4 - core index']
  #allocation1 [shape = 'u32[144,128]{1,0:T(1,128)}', space=vmem, size = 0x12000, scoped, tag = 'internal scratch']
  %s0 = inlined_call_operand.hbm [shape: f32[2,8,32], index: 0, kind: input, shape index: {}]
  %s1 = inlined_call_operand.hbm [shape: f32[32,32], index: 1, kind: input, shape index: {}]
  %s2 = inlined_call_operand.vmem [shape: f32[1,32], index: 2, kind: input, shape index: {}]
  %s3 = inlined_call_operand.hbm [shape: f32[2,8,32], index: 3, kind: input, shape index: {}]
  %s4 = inlined_call_operand.hbm [shape: f32[2,8,8], index: 4, kind: output, shape index: {}]
  %s5 = sld [smem:[#allocation0]]
  $region38: #{tpu_custom_call.1} parent=0
    _
  %s7 = ssub.s32 1, %s5
  %s8 = scalar_select 0, %s7, %s5
  $region1: #{tpu_custom_call.1} parent=0
    #allocation2 [shape = 'u8[8192]{0}', space=vmem, size = 0x2000, scoped, tag = 'input window, operand 0, single buffered']
    #allocation3 [shape = 's32[1]{0}', space=sflag, size = 0x4, scoped, tag = 'scoped memory for tpu_custom_call.1']
    #allocation4 [shape = 's32[1]{0}', space=sflag, size = 0x4, scoped, tag = 'scoped memory for tpu_custom_call.1']
    #allocation5 [shape = 'u8[16384]{0}', space=vmem, size = 0x4000, scoped, tag = 'input window, operand 1, single buffered']
    #allocation6 [shape = 's32[1]{0}', space=sflag, size = 0x4, scoped, tag = 'scoped memory for tpu_custom_call.1']
    #allocation7 [shape = 'u8[8192]{0}', space=vmem, size = 0x2000, scoped, tag = 'input window, operand 3, single buffered']
    #allocation8 [shape = 'u8[8192]{0}', space=vmem, size = 0x2000, scoped, tag = 'output window, operand 0, single buffered']
    %9 = vsyncpa [#allocation3], 0
    %10 = vsyncpa [#allocation6], 0
    %11 = vsyncpa [#allocation4], 0
    // Predicated region
    $region2: #{tpu_custom_call.1} parent=1 // pred_check
      _
    $region3: #{tpu_custom_call.1} parent=1 // pred_check_branch
      %13 = sbr.rel (0) target = $region5
    $region4: #{tpu_custom_call.1} parent=1 // pred_region
      %s15 = ssub.s32 256, 256
      %16 = vsyncadd [#allocation3], %s15
      %s17 = sshll.u32 [#allocation2], 4
      %s18 = int_to_ptr.vmem [resolvable:$true] %s17
      %23 = dma.hbm_to_vmem [thread:$0]  %s0, 256, %s18, [#allocation3], 128, 128, 8
    $region5: #{tpu_custom_call.1} parent=1 // pred_fallthru
      _
    // Predicated region
    $region6: #{tpu_custom_call.1} parent=1 // pred_check
      _
    $region7: #{tpu_custom_call.1} parent=1 // pred_check_branch
      %25 = sbr.rel (0) target = $region9
    $region8: #{tpu_custom_call.1} parent=1 // pred_region
      %s27 = ssub.s32 512, 512
      %28 = vsyncadd [#allocation6], %s27
      %s29 = sshll.u32 [#allocation5], 4
      %s30 = int_to_ptr.vmem [resolvable:$true] %s29
      %35 = dma.hbm_to_vmem [thread:$0]  %s1, 512, %s30, [#allocation6], 128, 128, 8
    $region9: #{tpu_custom_call.1} parent=1 // pred_fallthru
      _
    // Predicated region
    $region10: #{tpu_custom_call.1} parent=1 // pred_check
      _
    $region11: #{tpu_custom_call.1} parent=1 // pred_check_branch
      %37 = sbr.rel (0) target = $region13
    $region12: #{tpu_custom_call.1} parent=1 // pred_region
      _
    $region13: #{tpu_custom_call.1} parent=1 // pred_fallthru
      _
    // Predicated region
    $region14: #{tpu_custom_call.1} parent=1 // pred_check
      _
    $region15: #{tpu_custom_call.1} parent=1 // pred_check_branch
      %39 = sbr.rel (0) target = $region17
    $region16: #{tpu_custom_call.1} parent=1 // pred_region
      %s41 = ssub.s32 256, 256
      %42 = vsyncadd [#allocation6], %s41
      %s43 = sshll.u32 [#allocation7], 4
      %s44 = int_to_ptr.vmem [resolvable:$true] %s43
      %49 = dma.hbm_to_vmem [thread:$0]  %s3, 256, %s44, [#allocation6], 128, 128, 8
    $region17: #{tpu_custom_call.1} parent=1 // pred_fallthru
      _
    // Predicated region
    $region18: #{tpu_custom_call.1} parent=1 // pred_check
      _
    $region19: #{tpu_custom_call.1} parent=1 // pred_check_branch
      %51 = sbr.rel (0) target = $region21
    $region20: #{tpu_custom_call.1} parent=1 // pred_region
      %52 = dma.done [#allocation3], 256
    $region21: #{tpu_custom_call.1} parent=1 // pred_fallthru
      _
    // Predicated region
    $region22: #{tpu_custom_call.1} parent=1 // pred_check
      _
    $region23: #{tpu_custom_call.1} parent=1 // pred_check_branch
      %54 = sbr.rel (0) target = $region25
    $region24: #{tpu_custom_call.1} parent=1 // pred_region
      %55 = dma.done [#allocation6], 512
    $region25: #{tpu_custom_call.1} parent=1 // pred_fallthru
      _
    // Predicated region
    $region26: #{tpu_custom_call.1} parent=1 // pred_check
      _
    $region27: #{tpu_custom_call.1} parent=1 // pred_check_branch
      %57 = sbr.rel (0) target = $region29
    $region28: #{tpu_custom_call.1} parent=1 // pred_region
      %58 = dma.done [#allocation6], 256
    $region29: #{tpu_custom_call.1} parent=1 // pred_fallthru
      _
    %v59 = vld [vmem:[#allocation2] sm:$0xff]
    %v60 = vld [vmem:[#allocation2 + $0x8] sm:$0xff]
    %v61 = vld [vmem:[#allocation5] sm:$0xff]
    %v62 = vld [vmem:[#allocation5 + $0x8] sm:$0xff]
    %v63 = vld [vmem:[#allocation5 + $0x10] sm:$0xff]
    %v64 = vld [vmem:[#allocation5 + $0x18] sm:$0xff]
    %v65 = vld [vmem:[%s2] sm:$0x1]
    %v67 = vlaneseq
    %v68 = vshrl.u32 %v67, 7
    %v69 = vsub.s32 0, %v68
    %v70 = vrot.slane %v65, %v69
    %vm72 = vcmask 261120
    %v74 = vsel %vm72, %v59, 0
    %v77 = vsel %vm72, %v60, 0
    %79 = vmatprep.subr.mxu0 0.0
    %80 = vmatpush1.msra.mxu0 0.0
    %81 = vmatprep.subr.mxu0 0.0
    %82 = vmatpush1.msra.mxu0 0.0
    %83 = vmatprep.subr.mxu0 0.0
    %84 = vmatpush1.msra.mxu0 0.0
    %85 = vmatprep.subr.mxu0 0.0
    %86 = vmatpush1.msra.mxu0 0.0
    %87 = vmatprep.subr.mxu0 0.0
    %88 = vmatpush1.msra.mxu0 0.0
    %89 = vmatprep.subr.mxu0 0.0
    %90 = vmatpush1.msra.mxu0 0.0
    %91 = vmatprep.subr.mxu0 0.0
    %92 = vmatpush1.msra.mxu0 0.0
    %93 = vmatprep.subr.mxu0 0.0
    %94 = vmatpush1.msra.mxu0 0.0
    %95 = vmatprep.subr.mxu0 0.0
    %96 = vmatpush1.msra.mxu0 0.0
    %97 = vmatprep.subr.mxu0 0.0
    %98 = vmatpush1.msra.mxu0 0.0
    %99 = vmatprep.subr.mxu0 0.0
    %100 = vmatpush1.msra.mxu0 0.0
    %101 = vmatprep.subr.mxu0 0.0
    %102 = vmatpush1.msra.mxu0 0.0
    %103 = vmatprep.subr.mxu0 0.0
    %104 = vmatpush1.msra.mxu0 %v64
    %105 = vmatprep.subr.mxu0 0.0
    %106 = vmatpush1.msra.mxu0 %v63
    %107 = vmatprep.subr.mxu0 0.0
    %108 = vmatpush1.msra.mxu0 %v62
    %109 = vmatprep.subr.mxu0 0.0
    %110 = vmatpush1.msra.mxu0 %v61
    %111 = vmatprep.subr.mxu0 0.0
    %112 = vmatpush2.msra.mxu0 0.0
    %113 = vmatprep.subr.mxu0 0.0
    %114 = vmatpush2.msra.mxu0 0.0
    %115 = vmatprep.subr.mxu0 0.0
    %116 = vmatpush2.msra.mxu0 0.0
    %117 = vmatprep.subr.mxu0 0.0
    %118 = vmatpush2.msra.mxu0 0.0
    %119 = vmatprep.subr.mxu0 0.0
    %120 = vmatpush2.msra.mxu0 0.0
    %121 = vmatprep.subr.mxu0 0.0
    %122 = vmatpush2.msra.mxu0 0.0
    %123 = vmatprep.subr.mxu0 0.0
    %124 = vmatpush2.msra.mxu0 0.0
    %125 = vmatprep.subr.mxu0 0.0
    %126 = vmatpush2.msra.mxu0 0.0
    %127 = vmatprep.subr.mxu0 0.0
    %128 = vmatpush2.msra.mxu0 0.0
    %129 = vmatprep.subr.mxu0 0.0
    %130 = vmatpush2.msra.mxu0 0.0
    %131 = vmatprep.subr.mxu0 0.0
    %132 = vmatpush2.msra.mxu0 0.0
    %133 = vmatprep.subr.mxu0 0.0
    %134 = vmatpush2.msra.mxu0 0.0
    %135 = vmatprep.subr.mxu0 0.0
    %136 = vmatpush2.msra.mxu0 0.0
    %137 = vmatprep.subr.mxu0 0.0
    %138 = vmatpush2.msra.mxu0 0.0
    %139 = vmatprep.subr.mxu0 0.0
    %140 = vmatpush2.msra.mxu0 0.0
    %141 = vmatprep.subr.mxu0 0.0
    %142 = vmatpush2.msra.mxu0 0.0
    %143 = vmatprep.mubr.f32.mxu0 0.0
    %144 = vmatmul.mubr.f32.gmra.mxu0 %v74
    %v145 = vpop.f32.mrf.mxu0
    %v146 = vadd.f32 %v70, %v145
    %v147 = vpop.f32.mrf.mxu0
    %148 = vmatprep.mubr.f32.mxu0 0.0
    %149 = vmatmul.mubr.f32.gmra.mxu0 %v77
    %v150 = vpop.f32.mrf.mxu0
    %v151 = vadd.f32 %v70, %v150
    %v152 = vpop.f32.mrf.mxu0
    %153 = vdwg.mxu0
    %v154 = vld [vmem:[#allocation7] sm:$0xff]
    %v155 = vld [vmem:[#allocation7 + $0x8] sm:$0xff]
    %v157 = vsel %vm72, %v146, 0
    %v160 = vsel %vm72, %v154, 0
    %162 = vmatprep.subr.mxu0 0.0
    %163 = vmatpush1.xpose.msra.mxu0 0.0
    %164 = vmatprep.subr.mxu0 0.0
    %165 = vmatpush1.xpose.msra.mxu0 0.0
    %166 = vmatprep.subr.mxu0 0.0
    %167 = vmatpush1.xpose.msra.mxu0 0.0
    %168 = vmatprep.subr.mxu0 0.0
    %169 = vmatpush1.xpose.msra.mxu0 0.0
    %170 = vmatprep.subr.mxu0 0.0
    %171 = vmatpush1.xpose.msra.mxu0 0.0
    %172 = vmatprep.subr.mxu0 0.0
    %173 = vmatpush1.xpose.msra.mxu0 0.0
    %174 = vmatprep.subr.mxu0 0.0
    %175 = vmatpush1.xpose.msra.mxu0 0.0
    %176 = vmatprep.subr.mxu0 0.0
    %177 = vmatpush1.xpose.msra.mxu0 0.0
    %178 = vmatprep.subr.mxu0 0.0
    %179 = vmatpush1.xpose.msra.mxu0 0.0
    %180 = vmatprep.subr.mxu0 0.0
    %181 = vmatpush1.xpose.msra.mxu0 0.0
    %182 = vmatprep.subr.mxu0 0.0
    %183 = vmatpush1.xpose.msra.mxu0 0.0
    %184 = vmatprep.subr.mxu0 0.0
    %185 = vmatpush1.xpose.msra.mxu0 0.0
    %186 = vmatprep.subr.mxu0 0.0
    %187 = vmatpush1.xpose.msra.mxu0 0.0
    %188 = vmatprep.subr.mxu0 0.0
    %189 = vmatpush1.xpose.msra.mxu0 0.0
    %190 = vmatprep.subr.mxu0 0.0
    %191 = vmatpush1.xpose.msra.mxu0 0.0
    %192 = vmatprep.subr.mxu0 0.0
    %193 = vmatpush1.xpose.msra.mxu0 %v160
    %194 = vmatprep.subr.mxu0 0.0
    %195 = vmatpush2.xpose.msra.mxu0 0.0
    %196 = vmatprep.subr.mxu0 0.0
    %197 = vmatpush2.xpose.msra.mxu0 0.0
    %198 = vmatprep.subr.mxu0 0.0
    %199 = vmatpush2.xpose.msra.mxu0 0.0
    %200 = vmatprep.subr.mxu0 0.0
    %201 = vmatpush2.xpose.msra.mxu0 0.0
    %202 = vmatprep.subr.mxu0 0.0
    %203 = vmatpush2.xpose.msra.mxu0 0.0
    %204 = vmatprep.subr.mxu0 0.0
    %205 = vmatpush2.xpose.msra.mxu0 0.0
    %206 = vmatprep.subr.mxu0 0.0
    %207 = vmatpush2.xpose.msra.mxu0 0.0
    %208 = vmatprep.subr.mxu0 0.0
    %209 = vmatpush2.xpose.msra.mxu0 0.0
    %210 = vmatprep.subr.mxu0 0.0
    %211 = vmatpush2.xpose.msra.mxu0 0.0
    %212 = vmatprep.subr.mxu0 0.0
    %213 = vmatpush2.xpose.msra.mxu0 0.0
    %214 = vmatprep.subr.mxu0 0.0
    %215 = vmatpush2.xpose.msra.mxu0 0.0
    %216 = vmatprep.subr.mxu0 0.0
    %217 = vmatpush2.xpose.msra.mxu0 0.0
    %218 = vmatprep.subr.mxu0 0.0
    %219 = vmatpush2.xpose.msra.mxu0 0.0
    %220 = vmatprep.subr.mxu0 0.0
    %221 = vmatpush2.xpose.msra.mxu0 0.0
    %222 = vmatprep.subr.mxu0 0.0
    %223 = vmatpush2.xpose.msra.mxu0 0.0
    %224 = vmatprep.subr.mxu0 0.0
    %225 = vmatpush2.xpose.msra.mxu0 0.0
    %226 = vmatprep.mubr.f32.mxu0 0.0
    %227 = vmatmul.mubr.f32.gmra.mxu0 %v157
    %v228 = vpop.f32.mrf.mxu0
    %v229 = vadd.f32 0.0, %v228
    %v230 = vpop.f32.mrf.mxu0
    %231 = vdwg.mxu0
    %v233 = vsel %vm72, %v151, 0
    %v236 = vsel %vm72, %v155, 0
    %238 = vmatprep.subr.mxu0 0.0
    %239 = vmatpush1.xpose.msra.mxu0 0.0
    %240 = vmatprep.subr.mxu0 0.0
    %241 = vmatpush1.xpose.msra.mxu0 0.0
    %242 = vmatprep.subr.mxu0 0.0
    %243 = vmatpush1.xpose.msra.mxu0 0.0
    %244 = vmatprep.subr.mxu0 0.0
    %245 = vmatpush1.xpose.msra.mxu0 0.0
    %246 = vmatprep.subr.mxu0 0.0
    %247 = vmatpush1.xpose.msra.mxu0 0.0
    %248 = vmatprep.subr.mxu0 0.0
    %249 = vmatpush1.xpose.msra.mxu0 0.0
    %250 = vmatprep.subr.mxu0 0.0
    %251 = vmatpush1.xpose.msra.mxu0 0.0
    %252 = vmatprep.subr.mxu0 0.0
    %253 = vmatpush1.xpose.msra.mxu0 0.0
    %254 = vmatprep.subr.mxu0 0.0
    %255 = vmatpush1.xpose.msra.mxu0 0.0
    %256 = vmatprep.subr.mxu0 0.0
    %257 = vmatpush1.xpose.msra.mxu0 0.0
    %258 = vmatprep.subr.mxu0 0.0
    %259 = vmatpush1.xpose.msra.mxu0 0.0
    %260 = vmatprep.subr.mxu0 0.0
    %261 = vmatpush1.xpose.msra.mxu0 0.0
    %262 = vmatprep.subr.mxu0 0.0
    %263 = vmatpush1.xpose.msra.mxu0 0.0
    %264 = vmatprep.subr.mxu0 0.0
    %265 = vmatpush1.xpose.msra.mxu0 0.0
    %266 = vmatprep.subr.mxu0 0.0
    %267 = vmatpush1.xpose.msra.mxu0 0.0
    %268 = vmatprep.subr.mxu0 0.0
    %269 = vmatpush1.xpose.msra.mxu0 %v236
    %270 = vmatprep.subr.mxu0 0.0
    %271 = vmatpush2.xpose.msra.mxu0 0.0
    %272 = vmatprep.subr.mxu0 0.0
    %273 = vmatpush2.xpose.msra.mxu0 0.0
    %274 = vmatprep.subr.mxu0 0.0
    %275 = vmatpush2.xpose.msra.mxu0 0.0
    %276 = vmatprep.subr.mxu0 0.0
    %277 = vmatpush2.xpose.msra.mxu0 0.0
    %278 = vmatprep.subr.mxu0 0.0
    %279 = vmatpush2.xpose.msra.mxu0 0.0
    %280 = vmatprep.subr.mxu0 0.0
    %281 = vmatpush2.xpose.msra.mxu0 0.0
    %282 = vmatprep.subr.mxu0 0.0
    %283 = vmatpush2.xpose.msra.mxu0 0.0
    %284 = vmatprep.subr.mxu0 0.0
    %285 = vmatpush2.xpose.msra.mxu0 0.0
    %286 = vmatprep.subr.mxu0 0.0
    %287 = vmatpush2.xpose.msra.mxu0 0.0
    %288 = vmatprep.subr.mxu0 0.0
    %289 = vmatpush2.xpose.msra.mxu0 0.0
    %290 = vmatprep.subr.mxu0 0.0
    %291 = vmatpush2.xpose.msra.mxu0 0.0
    %292 = vmatprep.subr.mxu0 0.0
    %293 = vmatpush2.xpose.msra.mxu0 0.0
    %294 = vmatprep.subr.mxu0 0.0
    %295 = vmatpush2.xpose.msra.mxu0 0.0
    %296 = vmatprep.subr.mxu0 0.0
    %297 = vmatpush2.xpose.msra.mxu0 0.0
    %298 = vmatprep.subr.mxu0 0.0
    %299 = vmatpush2.xpose.msra.mxu0 0.0
    %300 = vmatprep.subr.mxu0 0.0
    %301 = vmatpush2.xpose.msra.mxu0 0.0
    %302 = vmatprep.mubr.f32.mxu0 0.0
    %303 = vmatmul.mubr.f32.gmra.mxu0 %v233
    %v304 = vpop.f32.mrf.mxu0
    %v305 = vadd.f32 0.0, %v304
    %v306 = vpop.f32.mrf.mxu0
    %307 = vdwg.mxu0
    %vm308 = vcmask 64512
    %v309 = vsel %vm308, %v229, -inf
    %310 = vmax.xlane.f32.xlu0 %v309
    %v311 = vpop.xlane.xlu0 %310
    %v312 = vsel %vm308, %v305, -inf
    %313 = vmax.xlane.f32.xlu0 %v312
    %v314 = vpop.xlane.xlu0 %313
    %v315 = vsub.f32 %v229, %v311
    %v316 = vsub.f32 %v305, %v314
    %v317 = vmul.f32 %v315, 1.442695
    %v318 = vpow.pop %v317
    %v319 = vmul.f32 %v316, 1.442695
    %v320 = vpow.pop %v319
    %v321 = vsel %vm308, %v318, 0.0
    %322 = vadd.xlane.f32.xlu0 %v321
    %v323 = vpop.xlane.xlu0 %322
    %v324 = vsel %vm308, %v320, 0.0
    %325 = vadd.xlane.f32.xlu0 %v324
    %v326 = vpop.xlane.xlu0 %325
    %v327 = vrcp.pop %v323
    %v328 = vrcp.pop %v326
    %v329 = vmul.f32 %v318, %v327
    %v330 = vmul.f32 %v320, %v328
    %331 = vst.msk [vmem:[#allocation8] sm:$0xff] %vm308, %v329
    %332 = vst.msk [vmem:[#allocation8 + $0x8] sm:$0xff] %vm308, %v330
    // Predicated region
    $region30: #{tpu_custom_call.1} parent=1 // pred_check
      _
    $region31: #{tpu_custom_call.1} parent=1 // pred_check_branch
      %334 = sbr.rel (0) target = $region33
    $region32: #{tpu_custom_call.1} parent=1 // pred_region
      %s336 = ssub.s32 256, 256
      %337 = vsyncadd [#allocation4], %s336
      %s338 = sshll.u32 [#allocation8], 4
      %s339 = int_to_ptr.vmem [resolvable:$true] %s338
      %344 = dma.vmem_to_hbm [thread:$0]  %s339, 256, %s4, [#allocation4], 128, 128, 8
    $region33: #{tpu_custom_call.1} parent=1 // pred_fallthru
      _
    // Predicated region
    $region34: #{tpu_custom_call.1} parent=1 // pred_check
      _
    $region35: #{tpu_custom_call.1} parent=1 // pred_check_branch
      %346 = sbr.rel (0) target = $region37
    $region36: #{tpu_custom_call.1} parent=1 // pred_region
      %347 = dma.done [#allocation4], 256
    $region37: #{tpu_custom_call.1} parent=1 // pred_fallthru
      _
    %348 = vsyncpa [#allocation3], 1
    %349 = vsyncpa [#allocation6], 1
    %350 = vsyncpa [#allocation4], 1

</llo_original>
